<compile_context>
chip_gen: v6e
topology: v6e:2x2x1
jax: 0.10.0
libtpu: 0.0.40
codegen_flags: <defaults>
</compile_context>

<pallas_src>
import math

import jax
import jax.numpy as jnp
from jax import lax
from jax.experimental import pallas as pl
from jax.experimental.pallas import tpu as pltpu

_SQRT2 = 1.4142135623730951


def _round_up(n, m):
    return ((n + m - 1) // m) * m


def _gelu_exact(x):
    # matches torch.nn.GELU() (erf-based, non-approximate); keep in f32.
    # (tanh-approx GELU would route to the EUP slot but changes numerics.)
    return 0.5 * x * (1.0 + lax.erf(x / _SQRT2))


def dino_head_kernel(x_ref, w1_ref, b1_ref, w2_ref, b2_ref, w3_ref, b3_ref,
                     w4_ref, b4_ref, o_ref, z_ref):
    """Grid = (batch_tile i, out_dim_tile j).  z_ref: VMEM scratch carrying the
    normalized bottleneck activations for the current batch tile across j."""

    # Heavy MLP + normalize only when the out_dim tile index is 0; reused for
    # every subsequent w4 tile of this batch tile.
    @pl.when(pl.program_id(1) == 0)
    def _():
        x = x_ref[...]
        # mlp: Linear -> GELU -> Linear -> GELU -> Linear   (f32 accumulation)
        h = jnp.dot(x, w1_ref[...],
                    preferred_element_type=jnp.float32) + b1_ref[...]
        h = _gelu_exact(h)
        h = jnp.dot(h.astype(w2_ref.dtype), w2_ref[...],
                    preferred_element_type=jnp.float32) + b2_ref[...]
        h = _gelu_exact(h)
        z = jnp.dot(h.astype(w3_ref.dtype), w3_ref[...],
                    preferred_element_type=jnp.float32) + b3_ref[...]

        # F.normalize(z, dim=-1)  (p=2, eps=1e-12):  z * rsqrt(max(sum z^2, eps^2))
        sum_sq = jnp.sum(z * z, axis=-1, keepdims=True)
        inv_norm = lax.rsqrt(jnp.maximum(sum_sq, 1e-24))
        z_ref[...] = (z * inv_norm).astype(z_ref.dtype)

    # last_layer: stream one (bottleneck, block_n) tile of w4 per grid step.
    o_ref[...] = (jnp.dot(z_ref[...], w4_ref[...],
                          preferred_element_type=jnp.float32)
                  + b4_ref[...]).astype(o_ref.dtype)


def dino_head_forward(x, params, *, block_b=128, block_n=2048,
                      compute_dtype=jnp.bfloat16):
    """x: (B, in_dim) float32.  params: (w1,b1,w2,b2,w3,b3,w4,b4) in float32.

    block_b: batch tile (128 is safe everywhere; 256 is a good choice on
             v6e/v7x).  block_n: out_dim tile for the last layer (2048 is
             v7x-VMEM-safe; 4096-8192 is fine on v5e/v6e).
    """
    w1, b1, w2, b2, w3, b3, w4, b4 = params
    B, in_dim = x.shape
    hidden = w1.shape[1]
    bottleneck = w3.shape[1]
    out_dim = w4.shape[1]
    out_dtype = x.dtype

    # ---- tile sizes (clamped to the problem; pad to keep exact divisibility) ----
    bb = block_b if B >= block_b else _round_up(B, 8)
    Bp = _round_up(B, bb)
    bn = block_n if out_dim >= block_n else out_dim
    Np = _round_up(out_dim, bn)
    # NOTE: for production shapes keep in_dim/hidden/bottleneck/out_dim and
    # block_n multiples of 128 so stores are lane-dense and unmasked.

    # ---- operand preparation: bf16 MXU operands, f32 biases ----
    xc = x.astype(compute_dtype)
    if Bp != B:
        xc = jnp.pad(xc, ((0, Bp - B), (0, 0)))  # zero rows normalize to 0 safely
    w1c, w2c, w3c, w4c = (w.astype(compute_dtype) for w in (w1, w2, w3, w4))
    b1c, b2c, b3c, b4c = (b.reshape(1, -1).astype(jnp.float32)
                          for b in (b1, b2, b3, b4))
    if Np != out_dim:
        w4c = jnp.pad(w4c, ((0, 0), (0, Np - out_dim)))
        b4c = jnp.pad(b4c, ((0, 0), (0, Np - out_dim)))

    grid = (Bp // bb, Np // bn)

    # ---- VMEM budget: only raise the scoped limit when the tiles need it ----
    csz = jnp.dtype(compute_dtype).itemsize
    resident = ((in_dim * hidden + hidden * hidden + hidden * bottleneck) * csz
                + (2 * hidden + bottleneck) * 4)
    streamed = 2 * (bb * in_dim * csz                       # x tile
                    + bottleneck * bn * csz + bn * 4        # w4 / b4 tiles
                    + bb * bn * jnp.dtype(out_dtype).itemsize)  # out tile
    scratch_bytes = bb * bottleneck * csz
    need = 2 * resident + streamed + scratch_bytes
    vmem_limit = None
    if need > 16 * 1024 * 1024:
        vmem_limit = int(min(max(int(1.5 * need), 32 * 1024 * 1024),
                             128 * 1024 * 1024))

    def _const_spec(shape, single_buffer):
        # Grid-invariant weight: fetched once; single-buffer halves its VMEM.
        if single_buffer:
            return pl.BlockSpec(shape, lambda i, j: (0, 0),
                                pipeline_mode=pl.Buffered(1))
        return pl.BlockSpec(shape, lambda i, j: (0, 0))

    def _build(single_buffer_weights):
        in_specs = [
            pl.BlockSpec((bb, in_dim), lambda i, j: (i, 0)),
            _const_spec((in_dim, hidden), single_buffer_weights),
            _const_spec((1, hidden), single_buffer_weights),
            _const_spec((hidden, hidden), single_buffer_weights),
            _const_spec((1, hidden), single_buffer_weights),
            _const_spec((hidden, bottleneck), single_buffer_weights),
            _const_spec((1, bottleneck), single_buffer_weights),
            # last-layer weight/bias: stream along the out_dim grid axis.
            pl.BlockSpec((bottleneck, bn), lambda i, j: (0, j)),
            pl.BlockSpec((1, bn), lambda i, j: (0, j)),
        ]
        out_specs = pl.BlockSpec((bb, bn), lambda i, j: (i, j))
        return pl.pallas_call(
            dino_head_kernel,
            out_shape=jax.ShapeDtypeStruct((Bp, Np), out_dtype),
            grid=grid,
            in_specs=in_specs,
            out_specs=out_specs,
            scratch_shapes=[pltpu.VMEM((bb, bottleneck), compute_dtype)],
            compiler_params=pltpu.CompilerParams(
                dimension_semantics=("parallel", "arbitrary"),
                vmem_limit_bytes=vmem_limit),
        )(xc, w1c, b1c, w2c, b2c, w3c, b3c, w4c, b4c)

    try:
        out = jax.block_until_ready(_build(single_buffer_weights=True))
    except Exception:
        # Fallback if this jax build rejects pipeline_mode=pl.Buffered(1).
        out = _build(single_buffer_weights=False)

    return out[:B, :out_dim]


def init_dino_head_params(key, in_dim, out_dim, hidden_dim, bottleneck_dim):
    """Deterministic synthetic init mirroring DINOHead._init_weights:
    trunc_normal_(std=0.02, truncated at +/-2 in value space), zero biases."""
    def trunc_normal(k, shape, std=0.02):
        return (jax.random.truncated_normal(k, -2.0 / std, 2.0 / std, shape,
                                            dtype=jnp.float32) * std)

    ks = jax.random.split(key, 4)
    # stored transposed relative to torch: (in_features, out_features)
    w1 = trunc_normal(ks[0], (in_dim, hidden_dim))
    b1 = jnp.zeros((1, hidden_dim), jnp.float32)
    w2 = trunc_normal(ks[1], (hidden_dim, hidden_dim))
    b2 = jnp.zeros((1, hidden_dim), jnp.float32)
    w3 = trunc_normal(ks[2], (hidden_dim, bottleneck_dim))
    b3 = jnp.zeros((1, bottleneck_dim), jnp.float32)
    w4 = trunc_normal(ks[3], (bottleneck_dim, out_dim))
    b4 = jnp.zeros((1, out_dim), jnp.float32)
    return (w1, b1, w2, b2, w3, b3, w4, b4)


def dino_head_ref(x, params):
    """Pure f32 JAX reference (matches the PyTorch module numerics)."""
    w1, b1, w2, b2, w3, b3, w4, b4 = params
    h = _gelu_exact(x @ w1 + b1)
    h = _gelu_exact(h @ w2 + b2)
    z = h @ w3 + b3
    z = z / jnp.maximum(jnp.linalg.norm(z, axis=-1, keepdims=True), 1e-12)
    return z @ w4 + b4


def dino_head_ref_mixed(x, params, compute_dtype=jnp.bfloat16):
    """Reference using the same bf16-operand / f32-accumulation scheme as the
    kernel's fast path."""
    w1, b1, w2, b2, w3, b3, w4, b4 = params
    c = lambda a: a.astype(compute_dtype)
    dot = lambda a, b: jnp.dot(c(a), c(b), preferred_element_type=jnp.float32)
    h = _gelu_exact(dot(x, w1) + b1)
    h = _gelu_exact(dot(h, w2) + b2)
    z = dot(h, w3) + b3
    z = z * lax.rsqrt(jnp.maximum(jnp.sum(z * z, -1, keepdims=True), 1e-24))
    return (dot(z, w4) + b4).astype(x.dtype)


if __name__ == "__main__":
    # Small, module-consistent shapes (real DINOHead: hidden=2048,
    # bottleneck=256, out_dim up to 65536 — the same tiling handles those).
    B, IN_DIM, HIDDEN, BOTTLENECK, OUT_DIM = 16, 32, 64, 32, 16

    key = jax.random.PRNGKey(0)
    k_x, k_p = jax.random.split(key)
    x = jax.random.normal(k_x, (B, IN_DIM), dtype=jnp.float32)
    params = init_dino_head_params(k_p, IN_DIM, OUT_DIM, HIDDEN, BOTTLENECK)

    ref = dino_head_ref(x, params)

    # 1) f32 compute path: tight check against the exact f32 reference.
    out_f32 = jax.block_until_ready(
        dino_head_forward(x, params, compute_dtype=jnp.float32))
    assert out_f32.shape == (B, OUT_DIM)
    assert jnp.allclose(out_f32, ref, atol=2e-5, rtol=2e-5), \
        "f32 path mismatch vs JAX reference"

    # 2) bf16 MXU path (production config): check against a matched
    #    mixed-precision reference, and loosely against the f32 reference.
    out_bf16 = jax.block_until_ready(dino_head_forward(x, params))
    assert out_bf16.shape == (B, OUT_DIM)
    assert jnp.allclose(out_bf16, dino_head_ref_mixed(x, params),
                        atol=1e-4, rtol=1e-4), "bf16 path mismatch vs mixed ref"
    assert jnp.allclose(out_bf16, ref, atol=5e-3, rtol=5e-2), \
        "bf16 path too far from f32 reference"

    print("KERNEL_OK")
</pallas_src>

<mosaic_0001>
module attributes {stable_mosaic.version = 11 : i64} {
  func.func @dino_head_kernel(%arg0: i32, %arg1: i32, %arg2: memref<16x32xf32, #tpu.memory_space<vmem>>, %arg3: memref<32x64xf32, #tpu.memory_space<vmem>>, %arg4: memref<1x64xf32, #tpu.memory_space<vmem>>, %arg5: memref<64x64xf32, #tpu.memory_space<vmem>>, %arg6: memref<1x64xf32, #tpu.memory_space<vmem>>, %arg7: memref<64x32xf32, #tpu.memory_space<vmem>>, %arg8: memref<1x32xf32, #tpu.memory_space<vmem>>, %arg9: memref<32x16xf32, #tpu.memory_space<vmem>>, %arg10: memref<1x16xf32, #tpu.memory_space<vmem>>, %arg11: memref<16x16xf32, #tpu.memory_space<vmem>>, %arg12: memref<16x32xf32, #tpu.memory_space<vmem>>) attributes {dimension_semantics = [#tpu.dimension_semantics<parallel>, #tpu.dimension_semantics<arbitrary>], iteration_bounds = array<i64: 1, 1>, scalar_prefetch = 0 : i64, scratch_operands = 1 : i64, tpu.core_type = #tpu.core_type<tc>, window_params = [{transform_indices = @transform_0, window_bounds = array<i64: 16, 32>}, {pipeline_mode = #tpu.pipeline_mode<synchronous>, transform_indices = @transform_1, window_bounds = array<i64: 32, 64>}, {pipeline_mode = #tpu.pipeline_mode<synchronous>, transform_indices = @transform_2, window_bounds = array<i64: 1, 64>}, {pipeline_mode = #tpu.pipeline_mode<synchronous>, transform_indices = @transform_3, window_bounds = array<i64: 64, 64>}, {pipeline_mode = #tpu.pipeline_mode<synchronous>, transform_indices = @transform_4, window_bounds = array<i64: 1, 64>}, {pipeline_mode = #tpu.pipeline_mode<synchronous>, transform_indices = @transform_5, window_bounds = array<i64: 64, 32>}, {pipeline_mode = #tpu.pipeline_mode<synchronous>, transform_indices = @transform_6, window_bounds = array<i64: 1, 32>}, {transform_indices = @transform_7, window_bounds = array<i64: 32, 16>}, {transform_indices = @transform_8, window_bounds = array<i64: 1, 16>}, {transform_indices = @transform_9, window_bounds = array<i64: 16, 16>}]} {
    %c0_i32 = arith.constant 0 : i32
    %0 = arith.cmpi eq, %arg1, %c0_i32 : i32
    %1 = arith.extui %0 : i1 to i32
    %c0_i32_0 = arith.constant 0 : i32
    %2 = arith.cmpi ne, %1, %c0_i32_0 : i32
    scf.if %2 {
      %c0_8 = arith.constant 0 : index
      %c0_9 = arith.constant 0 : index
      %10 = vector.load %arg2[%c0_8, %c0_9] : memref<16x32xf32, #tpu.memory_space<vmem>>, vector<16x32xf32>
      %c0_10 = arith.constant 0 : index
      %c0_11 = arith.constant 0 : index
      %11 = vector.load %arg3[%c0_10, %c0_11] : memref<32x64xf32, #tpu.memory_space<vmem>>, vector<32x64xf32>
      %cst_12 = arith.constant dense<0.000000e+00> : vector<16x64xf32>
      %12 = tpu.matmul %10, %11, %cst_12 {dimension_numbers = #tpu.dot_dimension_numbers<[1], [0], [0], [1], [0, 0, 1, 1], [], []>} : vector<16x32xf32>, vector<32x64xf32>, vector<16x64xf32> -> vector<16x64xf32>
      %c0_13 = arith.constant 0 : index
      %c0_14 = arith.constant 0 : index
      %13 = vector.load %arg4[%c0_13, %c0_14] : memref<1x64xf32, #tpu.memory_space<vmem>>, vector<1x64xf32>
      %14 = vector.broadcast %13 : vector<1x64xf32> to vector<16x64xf32>
      %15 = arith.addf %12, %14 : vector<16x64xf32>
      %cst_15 = arith.constant 5.000000e-01 : f32
      %16 = vector.broadcast %cst_15 : f32 to vector<16x64xf32>
      %17 = arith.mulf %16, %15 : vector<16x64xf32>
      %cst_16 = arith.constant 1.41421354 : f32
      %18 = vector.broadcast %cst_16 : f32 to vector<16x64xf32>
      %19 = arith.divf %15, %18 : vector<16x64xf32>
      %20 = math.erf %19 : vector<16x64xf32>
      %cst_17 = arith.constant 1.000000e+00 : f32
      %21 = vector.broadcast %cst_17 : f32 to vector<16x64xf32>
      %22 = arith.addf %21, %20 : vector<16x64xf32>
      %23 = arith.mulf %17, %22 : vector<16x64xf32>
      %c0_18 = arith.constant 0 : index
      %c0_19 = arith.constant 0 : index
      %24 = vector.load %arg5[%c0_18, %c0_19] : memref<64x64xf32, #tpu.memory_space<vmem>>, vector<64x64xf32>
      %cst_20 = arith.constant dense<0.000000e+00> : vector<16x64xf32>
      %25 = tpu.matmul %23, %24, %cst_20 {dimension_numbers = #tpu.dot_dimension_numbers<[1], [0], [0], [1], [0, 0, 1, 1], [], []>} : vector<16x64xf32>, vector<64x64xf32>, vector<16x64xf32> -> vector<16x64xf32>
      %c0_21 = arith.constant 0 : index
      %c0_22 = arith.constant 0 : index
      %26 = vector.load %arg6[%c0_21, %c0_22] : memref<1x64xf32, #tpu.memory_space<vmem>>, vector<1x64xf32>
      %27 = vector.broadcast %26 : vector<1x64xf32> to vector<16x64xf32>
      %28 = arith.addf %25, %27 : vector<16x64xf32>
      %cst_23 = arith.constant 5.000000e-01 : f32
      %29 = vector.broadcast %cst_23 : f32 to vector<16x64xf32>
      %30 = arith.mulf %29, %28 : vector<16x64xf32>
      %cst_24 = arith.constant 1.41421354 : f32
      %31 = vector.broadcast %cst_24 : f32 to vector<16x64xf32>
      %32 = arith.divf %28, %31 : vector<16x64xf32>
      %33 = math.erf %32 : vector<16x64xf32>
      %cst_25 = arith.constant 1.000000e+00 : f32
      %34 = vector.broadcast %cst_25 : f32 to vector<16x64xf32>
      %35 = arith.addf %34, %33 : vector<16x64xf32>
      %36 = arith.mulf %30, %35 : vector<16x64xf32>
      %c0_26 = arith.constant 0 : index
      %c0_27 = arith.constant 0 : index
      %37 = vector.load %arg7[%c0_26, %c0_27] : memref<64x32xf32, #tpu.memory_space<vmem>>, vector<64x32xf32>
      %cst_28 = arith.constant dense<0.000000e+00> : vector<16x32xf32>
      %38 = tpu.matmul %36, %37, %cst_28 {dimension_numbers = #tpu.dot_dimension_numbers<[1], [0], [0], [1], [0, 0, 1, 1], [], []>} : vector<16x64xf32>, vector<64x32xf32>, vector<16x32xf32> -> vector<16x32xf32>
      %c0_29 = arith.constant 0 : index
      %c0_30 = arith.constant 0 : index
      %39 = vector.load %arg8[%c0_29, %c0_30] : memref<1x32xf32, #tpu.memory_space<vmem>>, vector<1x32xf32>
      %40 = vector.broadcast %39 : vector<1x32xf32> to vector<16x32xf32>
      %41 = arith.addf %38, %40 : vector<16x32xf32>
      %42 = arith.mulf %41, %41 : vector<16x32xf32>
      %cst_31 = arith.constant dense<0.000000e+00> : vector<16xf32>
      %43 = vector.multi_reduction <add>, %42, %cst_31 [1] : vector<16x32xf32> to vector<16xf32>
      %44 = vector.shape_cast %43 : vector<16xf32> to vector<16x1xf32>
      %cst_32 = arith.constant 1.000000e-24 : f32
      %45 = vector.broadcast %cst_32 : f32 to vector<16x1xf32>
      %46 = arith.maximumf %44, %45 : vector<16x1xf32>
      %47 = math.rsqrt %46 : vector<16x1xf32>
      %48 = vector.broadcast %47 : vector<16x1xf32> to vector<16x32xf32>
      %49 = arith.mulf %41, %48 : vector<16x32xf32>
      %c0_33 = arith.constant 0 : index
      %c0_34 = arith.constant 0 : index
      %50 = vector.load %arg12[%c0_33, %c0_34] : memref<16x32xf32, #tpu.memory_space<vmem>>, vector<16x32xf32>
      tpu.vector_store %arg12[%c0_33, %c0_34], %49 {strides = array<i32>} : memref<16x32xf32, #tpu.memory_space<vmem>>, vector<16x32xf32>,
    } else {
    }
    %c0 = arith.constant 0 : index
    %c0_1 = arith.constant 0 : index
    %3 = vector.load %arg12[%c0, %c0_1] : memref<16x32xf32, #tpu.memory_space<vmem>>, vector<16x32xf32>
    %c0_2 = arith.constant 0 : index
    %c0_3 = arith.constant 0 : index
    %4 = vector.load %arg9[%c0_2, %c0_3] : memref<32x16xf32, #tpu.memory_space<vmem>>, vector<32x16xf32>
    %cst = arith.constant dense<0.000000e+00> : vector<16x16xf32>
    %5 = tpu.matmul %3, %4, %cst {dimension_numbers = #tpu.dot_dimension_numbers<[1], [0], [0], [1], [0, 0, 1, 1], [], []>} : vector<16x32xf32>, vector<32x16xf32>, vector<16x16xf32> -> vector<16x16xf32>
    %c0_4 = arith.constant 0 : index
    %c0_5 = arith.constant 0 : index
    %6 = vector.load %arg10[%c0_4, %c0_5] : memref<1x16xf32, #tpu.memory_space<vmem>>, vector<1x16xf32>
    %7 = vector.broadcast %6 : vector<1x16xf32> to vector<16x16xf32>
    %8 = arith.addf %5, %7 : vector<16x16xf32>
    %c0_6 = arith.constant 0 : index
    %c0_7 = arith.constant 0 : index
    %9 = vector.load %arg11[%c0_6, %c0_7] : memref<16x16xf32, #tpu.memory_space<vmem>>, vector<16x16xf32>
    tpu.vector_store %arg11[%c0_6, %c0_7], %8 {strides = array<i32>} : memref<16x16xf32, #tpu.memory_space<vmem>>, vector<16x16xf32>,
    return
  }
  func.func @transform_0(%arg0: i32, %arg1: i32) -> (i32, i32) {
    %c0_i32 = arith.constant 0 : i32
    %c0_i32_0 = arith.constant 0 : i32
    return %arg0, %c0_i32 : i32, i32
  }
  func.func @transform_1(%arg0: i32, %arg1: i32) -> (i32, i32) {
    %c0_i32 = arith.constant 0 : i32
    %c0_i32_0 = arith.constant 0 : i32
    %c0_i32_1 = arith.constant 0 : i32
    return %c0_i32, %c0_i32_0 : i32, i32
  }
  func.func @transform_2(%arg0: i32, %arg1: i32) -> (i32, i32) {
    %c0_i32 = arith.constant 0 : i32
    %c0_i32_0 = arith.constant 0 : i32
    %c0_i32_1 = arith.constant 0 : i32
    return %c0_i32, %c0_i32_0 : i32, i32
  }
  func.func @transform_3(%arg0: i32, %arg1: i32) -> (i32, i32) {
    %c0_i32 = arith.constant 0 : i32
    %c0_i32_0 = arith.constant 0 : i32
    %c0_i32_1 = arith.constant 0 : i32
    return %c0_i32, %c0_i32_0 : i32, i32
  }
  func.func @transform_4(%arg0: i32, %arg1: i32) -> (i32, i32) {
    %c0_i32 = arith.constant 0 : i32
    %c0_i32_0 = arith.constant 0 : i32
    %c0_i32_1 = arith.constant 0 : i32
    return %c0_i32, %c0_i32_0 : i32, i32
  }
  func.func @transform_5(%arg0: i32, %arg1: i32) -> (i32, i32) {
    %c0_i32 = arith.constant 0 : i32
    %c0_i32_0 = arith.constant 0 : i32
    %c0_i32_1 = arith.constant 0 : i32
    return %c0_i32, %c0_i32_0 : i32, i32
  }
  func.func @transform_6(%arg0: i32, %arg1: i32) -> (i32, i32) {
    %c0_i32 = arith.constant 0 : i32
    %c0_i32_0 = arith.constant 0 : i32
    %c0_i32_1 = arith.constant 0 : i32
    return %c0_i32, %c0_i32_0 : i32, i32
  }
  func.func @transform_7(%arg0: i32, %arg1: i32) -> (i32, i32) {
    %c0_i32 = arith.constant 0 : i32
    %c0_i32_0 = arith.constant 0 : i32
    return %c0_i32, %arg1 : i32, i32
  }
  func.func @transform_8(%arg0: i32, %arg1: i32) -> (i32, i32) {
    %c0_i32 = arith.constant 0 : i32
    %c0_i32_0 = arith.constant 0 : i32
    return %c0_i32, %arg1 : i32, i32
  }
  func.func @transform_9(%arg0: i32, %arg1: i32) -> (i32, i32) {
    %c0_i32 = arith.constant 0 : i32
    return %arg0, %arg1 : i32, i32
  }
}

module attributes {stable_mosaic.version = 11 : i64} {
  func.func @dino_head_kernel(%arg0: i32, %arg1: i32, %arg2: memref<16x32xf32, #tpu.memory_space<vmem>>, %arg3: memref<32x64xf32, #tpu.memory_space<vmem>>, %arg4: memref<1x64xf32, #tpu.memory_space<vmem>>, %arg5: memref<64x64xf32, #tpu.memory_space<vmem>>, %arg6: memref<1x64xf32, #tpu.memory_space<vmem>>, %arg7: memref<64x32xf32, #tpu.memory_space<vmem>>, %arg8: memref<1x32xf32, #tpu.memory_space<vmem>>, %arg9: memref<32x16xf32, #tpu.memory_space<vmem>>, %arg10: memref<1x16xf32, #tpu.memory_space<vmem>>, %arg11: memref<16x16xf32, #tpu.memory_space<vmem>>, %arg12: memref<16x32xf32, #tpu.memory_space<vmem>>) attributes {dimension_semantics = [#tpu.dimension_semantics<parallel>, #tpu.dimension_semantics<arbitrary>], iteration_bounds = array<i64: 1, 1>, scalar_prefetch = 0 : i64, scratch_operands = 1 : i64, tpu.core_type = #tpu.core_type<tc>, window_params = [{transform_indices = @transform_0, window_bounds = array<i64: 16, 32>}, {pipeline_mode = #tpu.pipeline_mode<synchronous>, transform_indices = @transform_1, window_bounds = array<i64: 32, 64>}, {pipeline_mode = #tpu.pipeline_mode<synchronous>, transform_indices = @transform_2, window_bounds = array<i64: 1, 64>}, {pipeline_mode = #tpu.pipeline_mode<synchronous>, transform_indices = @transform_3, window_bounds = array<i64: 64, 64>}, {pipeline_mode = #tpu.pipeline_mode<synchronous>, transform_indices = @transform_4, window_bounds = array<i64: 1, 64>}, {pipeline_mode = #tpu.pipeline_mode<synchronous>, transform_indices = @transform_5, window_bounds = array<i64: 64, 32>}, {pipeline_mode = #tpu.pipeline_mode<synchronous>, transform_indices = @transform_6, window_bounds = array<i64: 1, 32>}, {transform_indices = @transform_7, window_bounds = array<i64: 32, 16>}, {transform_indices = @transform_8, window_bounds = array<i64: 1, 16>}, {transform_indices = @transform_9, window_bounds = array<i64: 16, 16>}]} {
    %c0_i32 = arith.constant 0 : i32
    %0 = arith.cmpi eq, %arg1, %c0_i32 : i32
    %1 = arith.extui %0 : i1 to i32
    %c0_i32_0 = arith.constant 0 : i32
    %2 = arith.cmpi ne, %1, %c0_i32_0 : i32
    scf.if %2 {
      %c0_8 = arith.constant 0 : index
      %c0_9 = arith.constant 0 : index
      %10 = vector.load %arg2[%c0_8, %c0_9] : memref<16x32xf32, #tpu.memory_space<vmem>>, vector<16x32xf32>
      %c0_10 = arith.constant 0 : index
      %c0_11 = arith.constant 0 : index
      %11 = vector.load %arg3[%c0_10, %c0_11] : memref<32x64xf32, #tpu.memory_space<vmem>>, vector<32x64xf32>
      %cst_12 = arith.constant dense<0.000000e+00> : vector<16x64xf32>
      %12 = tpu.matmul %10, %11, %cst_12 {dimension_numbers = #tpu.dot_dimension_numbers<[1], [0], [0], [1], [0, 0, 1, 1], [], []>} : vector<16x32xf32>, vector<32x64xf32>, vector<16x64xf32> -> vector<16x64xf32>
      %c0_13 = arith.constant 0 : index
      %c0_14 = arith.constant 0 : index
      %13 = vector.load %arg4[%c0_13, %c0_14] : memref<1x64xf32, #tpu.memory_space<vmem>>, vector<1x64xf32>
      %14 = vector.broadcast %13 : vector<1x64xf32> to vector<16x64xf32>
      %15 = arith.addf %12, %14 : vector<16x64xf32>
      %cst_15 = arith.constant 5.000000e-01 : f32
      %16 = vector.broadcast %cst_15 : f32 to vector<16x64xf32>
      %17 = arith.mulf %16, %15 : vector<16x64xf32>
      %cst_16 = arith.constant 1.41421354 : f32
      %18 = vector.broadcast %cst_16 : f32 to vector<16x64xf32>
      %19 = arith.divf %15, %18 : vector<16x64xf32>
      %20 = math.erf %19 : vector<16x64xf32>
      %cst_17 = arith.constant 1.000000e+00 : f32
      %21 = vector.broadcast %cst_17 : f32 to vector<16x64xf32>
      %22 = arith.addf %21, %20 : vector<16x64xf32>
      %23 = arith.mulf %17, %22 : vector<16x64xf32>
      %c0_18 = arith.constant 0 : index
      %c0_19 = arith.constant 0 : index
      %24 = vector.load %arg5[%c0_18, %c0_19] : memref<64x64xf32, #tpu.memory_space<vmem>>, vector<64x64xf32>
      %cst_20 = arith.constant dense<0.000000e+00> : vector<16x64xf32>
      %25 = tpu.matmul %23, %24, %cst_20 {dimension_numbers = #tpu.dot_dimension_numbers<[1], [0], [0], [1], [0, 0, 1, 1], [], []>} : vector<16x64xf32>, vector<64x64xf32>, vector<16x64xf32> -> vector<16x64xf32>
      %c0_21 = arith.constant 0 : index
      %c0_22 = arith.constant 0 : index
      %26 = vector.load %arg6[%c0_21, %c0_22] : memref<1x64xf32, #tpu.memory_space<vmem>>, vector<1x64xf32>
      %27 = vector.broadcast %26 : vector<1x64xf32> to vector<16x64xf32>
      %28 = arith.addf %25, %27 : vector<16x64xf32>
      %cst_23 = arith.constant 5.000000e-01 : f32
      %29 = vector.broadcast %cst_23 : f32 to vector<16x64xf32>
      %30 = arith.mulf %29, %28 : vector<16x64xf32>
      %cst_24 = arith.constant 1.41421354 : f32
      %31 = vector.broadcast %cst_24 : f32 to vector<16x64xf32>
      %32 = arith.divf %28, %31 : vector<16x64xf32>
      %33 = math.erf %32 : vector<16x64xf32>
      %cst_25 = arith.constant 1.000000e+00 : f32
      %34 = vector.broadcast %cst_25 : f32 to vector<16x64xf32>
      %35 = arith.addf %34, %33 : vector<16x64xf32>
      %36 = arith.mulf %30, %35 : vector<16x64xf32>
      %c0_26 = arith.constant 0 : index
      %c0_27 = arith.constant 0 : index
      %37 = vector.load %arg7[%c0_26, %c0_27] : memref<64x32xf32, #tpu.memory_space<vmem>>, vector<64x32xf32>
      %cst_28 = arith.constant dense<0.000000e+00> : vector<16x32xf32>
      %38 = tpu.matmul %36, %37, %cst_28 {dimension_numbers = #tpu.dot_dimension_numbers<[1], [0], [0], [1], [0, 0, 1, 1], [], []>} : vector<16x64xf32>, vector<64x32xf32>, vector<16x32xf32> -> vector<16x32xf32>
      %c0_29 = arith.constant 0 : index
      %c0_30 = arith.constant 0 : index
      %39 = vector.load %arg8[%c0_29, %c0_30] : memref<1x32xf32, #tpu.memory_space<vmem>>, vector<1x32xf32>
      %40 = vector.broadcast %39 : vector<1x32xf32> to vector<16x32xf32>
      %41 = arith.addf %38, %40 : vector<16x32xf32>
      %42 = arith.mulf %41, %41 : vector<16x32xf32>
      %cst_31 = arith.constant dense<0.000000e+00> : vector<16xf32>
      %43 = vector.multi_reduction <add>, %42, %cst_31 [1] : vector<16x32xf32> to vector<16xf32>
      %44 = vector.shape_cast %43 : vector<16xf32> to vector<16x1xf32>
      %cst_32 = arith.constant 1.000000e-24 : f32
      %45 = vector.broadcast %cst_32 : f32 to vector<16x1xf32>
      %46 = arith.maximumf %44, %45 : vector<16x1xf32>
      %47 = math.rsqrt %46 : vector<16x1xf32>
      %48 = vector.broadcast %47 : vector<16x1xf32> to vector<16x32xf32>
      %49 = arith.mulf %41, %48 : vector<16x32xf32>
      %c0_33 = arith.constant 0 : index
      %c0_34 = arith.constant 0 : index
      %50 = vector.load %arg12[%c0_33, %c0_34] : memref<16x32xf32, #tpu.memory_space<vmem>>, vector<16x32xf32>
      tpu.vector_store %arg12[%c0_33, %c0_34], %49 {strides = array<i32>} : memref<16x32xf32, #tpu.memory_space<vmem>>, vector<16x32xf32>,
    } else {
    }
    %c0 = arith.constant 0 : index
    %c0_1 = arith.constant 0 : index
    %3 = vector.load %arg12[%c0, %c0_1] : memref<16x32xf32, #tpu.memory_space<vmem>>, vector<16x32xf32>
    %c0_2 = arith.constant 0 : index
    %c0_3 = arith.constant 0 : index
    %4 = vector.load %arg9[%c0_2, %c0_3] : memref<32x16xf32, #tpu.memory_space<vmem>>, vector<32x16xf32>
    %cst = arith.constant dense<0.000000e+00> : vector<16x16xf32>
    %5 = tpu.matmul %3, %4, %cst {dimension_numbers = #tpu.dot_dimension_numbers<[1], [0], [0], [1], [0, 0, 1, 1], [], []>} : vector<16x32xf32>, vector<32x16xf32>, vector<16x16xf32> -> vector<16x16xf32>
    %c0_4 = arith.constant 0 : index
    %c0_5 = arith.constant 0 : index
    %6 = vector.load %arg10[%c0_4, %c0_5] : memref<1x16xf32, #tpu.memory_space<vmem>>, vector<1x16xf32>
    %7 = vector.broadcast %6 : vector<1x16xf32> to vector<16x16xf32>
    %8 = arith.addf %5, %7 : vector<16x16xf32>
    %c0_6 = arith.constant 0 : index
    %c0_7 = arith.constant 0 : index
    %9 = vector.load %arg11[%c0_6, %c0_7] : memref<16x16xf32, #tpu.memory_space<vmem>>, vector<16x16xf32>
    tpu.vector_store %arg11[%c0_6, %c0_7], %8 {strides = array<i32>} : memref<16x16xf32, #tpu.memory_space<vmem>>, vector<16x16xf32>,
    return
  }
  func.func @transform_0(%arg0: i32, %arg1: i32) -> (i32, i32) {
    %c0_i32 = arith.constant 0 : i32
    %c0_i32_0 = arith.constant 0 : i32
    return %arg0, %c0_i32 : i32, i32
  }
  func.func @transform_1(%arg0: i32, %arg1: i32) -> (i32, i32) {
    %c0_i32 = arith.constant 0 : i32
    %c0_i32_0 = arith.constant 0 : i32
    %c0_i32_1 = arith.constant 0 : i32
    return %c0_i32, %c0_i32_0 : i32, i32
  }
  func.func @transform_2(%arg0: i32, %arg1: i32) -> (i32, i32) {
    %c0_i32 = arith.constant 0 : i32
    %c0_i32_0 = arith.constant 0 : i32
    %c0_i32_1 = arith.constant 0 : i32
    return %c0_i32, %c0_i32_0 : i32, i32
  }
  func.func @transform_3(%arg0: i32, %arg1: i32) -> (i32, i32) {
    %c0_i32 = arith.constant 0 : i32
    %c0_i32_0 = arith.constant 0 : i32
    %c0_i32_1 = arith.constant 0 : i32
    return %c0_i32, %c0_i32_0 : i32, i32
  }
  func.func @transform_4(%arg0: i32, %arg1: i32) -> (i32, i32) {
    %c0_i32 = arith.constant 0 : i32
    %c0_i32_0 = arith.constant 0 : i32
    %c0_i32_1 = arith.constant 0 : i32
    return %c0_i32, %c0_i32_0 : i32, i32
  }
  func.func @transform_5(%arg0: i32, %arg1: i32) -> (i32, i32) {
    %c0_i32 = arith.constant 0 : i32
    %c0_i32_0 = arith.constant 0 : i32
    %c0_i32_1 = arith.constant 0 : i32
    return %c0_i32, %c0_i32_0 : i32, i32
  }
  func.func @transform_6(%arg0: i32, %arg1: i32) -> (i32, i32) {
    %c0_i32 = arith.constant 0 : i32
    %c0_i32_0 = arith.constant 0 : i32
    %c0_i32_1 = arith.constant 0 : i32
    return %c0_i32, %c0_i32_0 : i32, i32
  }
  func.func @transform_7(%arg0: i32, %arg1: i32) -> (i32, i32) {
    %c0_i32 = arith.constant 0 : i32
    %c0_i32_0 = arith.constant 0 : i32
    return %c0_i32, %arg1 : i32, i32
  }
  func.func @transform_8(%arg0: i32, %arg1: i32) -> (i32, i32) {
    %c0_i32 = arith.constant 0 : i32
    %c0_i32_0 = arith.constant 0 : i32
    return %c0_i32, %arg1 : i32, i32
  }
  func.func @transform_9(%arg0: i32, %arg1: i32) -> (i32, i32) {
    %c0_i32 = arith.constant 0 : i32
    return %arg0, %arg1 : i32, i32
  }
}

</mosaic_0001>

<llo_original>
// kernel: tpu_custom_call.1
$region0: #{tpu_custom_call.1}
  #allocation0 [shape = 'u32[]', space=smem, size = 0x4, offset = 0x4, fixed_abs, tag = 'smem constant byte address 0x4 - core index']
  #allocation1 [shape = 'u32[144,128]{1,0:T(1,128)}', space=vmem, size = 0x12000, scoped, tag = 'internal scratch']
  #allocation2 [shape = 'f32[16,32]{1,0:T(8,128)}', space=vmem, size = 0x2000, scoped, tag = 'scratch operand']
  %s0 = inlined_call_operand.vmem [shape: f32[16,32], index: 0, kind: input, shape index: {}]
  %s1 = inlined_call_operand.vmem [shape: f32[32,64], index: 1, kind: input, shape index: {}]
  %s2 = inlined_call_operand.vmem [shape: f32[1,64], index: 2, kind: input, shape index: {}]
  %s3 = inlined_call_operand.vmem [shape: f32[64,64], index: 3, kind: input, shape index: {}]
  %s4 = inlined_call_operand.vmem [shape: f32[1,64], index: 4, kind: input, shape index: {}]
  %s5 = inlined_call_operand.vmem [shape: f32[64,32], index: 5, kind: input, shape index: {}]
  %s6 = inlined_call_operand.vmem [shape: f32[1,32], index: 6, kind: input, shape index: {}]
  %s7 = inlined_call_operand.vmem [shape: f32[32,16], index: 7, kind: input, shape index: {}]
  %s8 = inlined_call_operand.vmem [shape: f32[1,16], index: 8, kind: input, shape index: {}]
  %s9 = inlined_call_operand.hbm [shape: f32[16,16], index: 9, kind: output, shape index: {}]
  %s10 = sld [smem:[#allocation0]]
  $region50: #{tpu_custom_call.1} parent=0
    _
  %s12 = ssub.s32 1, %s10
  %s13 = scalar_select 0, %s12, %s10
  $region1: #{tpu_custom_call.1} parent=0
    #allocation3 [shape = 'u8[8192]{0}', space=vmem, size = 0x2000, scoped, tag = 'output window, operand 0, single buffered']
    #allocation4 [shape = 's32[1]{0}', space=sflag, size = 0x4, scoped, tag = 'scoped memory for tpu_custom_call.1']
    %14 = vsyncpa [#allocation4], 0
    // Predicated region
    $region2: #{tpu_custom_call.1} parent=1 // pred_check
      _
    $region3: #{tpu_custom_call.1} parent=1 // pred_check_branch
      %16 = sbr.rel (0) target = $region5
    $region4: #{tpu_custom_call.1} parent=1 // pred_region
      _
    $region5: #{tpu_custom_call.1} parent=1 // pred_fallthru
      _
    // Predicated region
    $region6: #{tpu_custom_call.1} parent=1 // pred_check
      _
    $region7: #{tpu_custom_call.1} parent=1 // pred_check_branch
      %18 = sbr.rel (0) target = $region9
    $region8: #{tpu_custom_call.1} parent=1 // pred_region
      _
    $region9: #{tpu_custom_call.1} parent=1 // pred_fallthru
      _
    // Predicated region
    $region10: #{tpu_custom_call.1} parent=1 // pred_check
      _
    $region11: #{tpu_custom_call.1} parent=1 // pred_check_branch
      %20 = sbr.rel (0) target = $region13
    $region12: #{tpu_custom_call.1} parent=1 // pred_region
      _
    $region13: #{tpu_custom_call.1} parent=1 // pred_fallthru
      _
    // Predicated region
    $region14: #{tpu_custom_call.1} parent=1 // pred_check
      _
    $region15: #{tpu_custom_call.1} parent=1 // pred_check_branch
      %22 = sbr.rel (0) target = $region17
    $region16: #{tpu_custom_call.1} parent=1 // pred_region
      _
    $region17: #{tpu_custom_call.1} parent=1 // pred_fallthru
      _
    // Predicated region
    $region18: #{tpu_custom_call.1} parent=1 // pred_check
      _
    $region19: #{tpu_custom_call.1} parent=1 // pred_check_branch
      %24 = sbr.rel (0) target = $region21
    $region20: #{tpu_custom_call.1} parent=1 // pred_region
      _
    $region21: #{tpu_custom_call.1} parent=1 // pred_fallthru
      _
    // Predicated region
    $region22: #{tpu_custom_call.1} parent=1 // pred_check
      _
    $region23: #{tpu_custom_call.1} parent=1 // pred_check_branch
      %26 = sbr.rel (0) target = $region25
    $region24: #{tpu_custom_call.1} parent=1 // pred_region
      _
    $region25: #{tpu_custom_call.1} parent=1 // pred_fallthru
      _
    // Predicated region
    $region26: #{tpu_custom_call.1} parent=1 // pred_check
      _
    $region27: #{tpu_custom_call.1} parent=1 // pred_check_branch
      %28 = sbr.rel (0) target = $region29
    $region28: #{tpu_custom_call.1} parent=1 // pred_region
      _
    $region29: #{tpu_custom_call.1} parent=1 // pred_fallthru
      _
    // Predicated region
    $region30: #{tpu_custom_call.1} parent=1 // pred_check
      _
    $region31: #{tpu_custom_call.1} parent=1 // pred_check_branch
      %30 = sbr.rel (0) target = $region33
    $region32: #{tpu_custom_call.1} parent=1 // pred_region
      _
    $region33: #{tpu_custom_call.1} parent=1 // pred_fallthru
      _
    // Predicated region
    $region34: #{tpu_custom_call.1} parent=1 // pred_check
      _
    $region35: #{tpu_custom_call.1} parent=1 // pred_check_branch
      %32 = sbr.rel (0) target = $region37
    $region36: #{tpu_custom_call.1} parent=1 // pred_region
      _
    $region37: #{tpu_custom_call.1} parent=1 // pred_fallthru
      _
    %p33 = scmp.eq.s32.totalorder 0, 0
    // Predicated region
    $region38: #{tpu_custom_call.1} parent=1 // pred_check
      %p34 = pneg %p33
    $region39: #{tpu_custom_call.1} parent=1 // pred_check_branch
      %36 = sbr.rel (%p34) target = $region41
    $region40: #{tpu_custom_call.1} parent=1 // pred_region
      %v37 = vld [vmem:[%s0] sm:$0xff]
      %v38 = vld [vmem:[%s0 + $0x8] sm:$0xff]
      %v39 = vld [vmem:[%s1] sm:$0xff]
      %v40 = vld [vmem:[%s1 + $0x8] sm:$0xff]
      %v41 = vld [vmem:[%s1 + $0x10] sm:$0xff]
      %v42 = vld [vmem:[%s1 + $0x18] sm:$0xff]
      %v43 = vld [vmem:[%s2] sm:$0x1]
      %v45 = vlaneseq
      %v46 = vshrl.u32 %v45, 7
      %v47 = vsub.s32 0, %v46
      %v48 = vrot.slane %v43, %v47
      %vm50 = vcmask 261120
      %v52 = vsel %vm50, %v37, 0
      %v55 = vsel %vm50, %v38, 0
      %57 = vmatprep.subr.mxu0 0.0
      %58 = vmatpush1.msra.mxu0 0.0
      %59 = vmatprep.subr.mxu0 0.0
      %60 = vmatpush1.msra.mxu0 0.0
      %61 = vmatprep.subr.mxu0 0.0
      %62 = vmatpush1.msra.mxu0 0.0
      %63 = vmatprep.subr.mxu0 0.0
      %64 = vmatpush1.msra.mxu0 0.0
      %65 = vmatprep.subr.mxu0 0.0
      %66 = vmatpush1.msra.mxu0 0.0
      %67 = vmatprep.subr.mxu0 0.0
      %68 = vmatpush1.msra.mxu0 0.0
      %69 = vmatprep.subr.mxu0 0.0
      %70 = vmatpush1.msra.mxu0 0.0
      %71 = vmatprep.subr.mxu0 0.0
      %72 = vmatpush1.msra.mxu0 0.0
      %73 = vmatprep.subr.mxu0 0.0
      %74 = vmatpush1.msra.mxu0 0.0
      %75 = vmatprep.subr.mxu0 0.0
      %76 = vmatpush1.msra.mxu0 0.0
      %77 = vmatprep.subr.mxu0 0.0
      %78 = vmatpush1.msra.mxu0 0.0
      %79 = vmatprep.subr.mxu0 0.0
      %80 = vmatpush1.msra.mxu0 0.0
      %81 = vmatprep.subr.mxu0 0.0
      %82 = vmatpush1.msra.mxu0 %v42
      %83 = vmatprep.subr.mxu0 0.0
      %84 = vmatpush1.msra.mxu0 %v41
      %85 = vmatprep.subr.mxu0 0.0
      %86 = vmatpush1.msra.mxu0 %v40
      %87 = vmatprep.subr.mxu0 0.0
      %88 = vmatpush1.msra.mxu0 %v39
      %89 = vmatprep.subr.mxu0 0.0
      %90 = vmatpush2.msra.mxu0 0.0
      %91 = vmatprep.subr.mxu0 0.0
      %92 = vmatpush2.msra.mxu0 0.0
      %93 = vmatprep.subr.mxu0 0.0
      %94 = vmatpush2.msra.mxu0 0.0
      %95 = vmatprep.subr.mxu0 0.0
      %96 = vmatpush2.msra.mxu0 0.0
      %97 = vmatprep.subr.mxu0 0.0
      %98 = vmatpush2.msra.mxu0 0.0
      %99 = vmatprep.subr.mxu0 0.0
      %100 = vmatpush2.msra.mxu0 0.0
      %101 = vmatprep.subr.mxu0 0.0
      %102 = vmatpush2.msra.mxu0 0.0
      %103 = vmatprep.subr.mxu0 0.0
      %104 = vmatpush2.msra.mxu0 0.0
      %105 = vmatprep.subr.mxu0 0.0
      %106 = vmatpush2.msra.mxu0 0.0
      %107 = vmatprep.subr.mxu0 0.0
      %108 = vmatpush2.msra.mxu0 0.0
      %109 = vmatprep.subr.mxu0 0.0
      %110 = vmatpush2.msra.mxu0 0.0
      %111 = vmatprep.subr.mxu0 0.0
      %112 = vmatpush2.msra.mxu0 0.0
      %113 = vmatprep.subr.mxu0 0.0
      %114 = vmatpush2.msra.mxu0 0.0
      %115 = vmatprep.subr.mxu0 0.0
      %116 = vmatpush2.msra.mxu0 0.0
      %117 = vmatprep.subr.mxu0 0.0
      %118 = vmatpush2.msra.mxu0 0.0
      %119 = vmatprep.subr.mxu0 0.0
      %120 = vmatpush2.msra.mxu0 0.0
      %121 = vmatprep.mubr.f32.mxu0 0.0
      %122 = vmatmul.mubr.f32.gmra.mxu0 %v52
      %v123 = vpop.f32.mrf.mxu0
      %v124 = vadd.f32 %v48, %v123
      %v125 = vpop.f32.mrf.mxu0
      %126 = vmatprep.mubr.f32.mxu0 0.0
      %127 = vmatmul.mubr.f32.gmra.mxu0 %v55
      %v128 = vpop.f32.mrf.mxu0
      %v129 = vadd.f32 %v48, %v128
      %v130 = vpop.f32.mrf.mxu0
      %131 = vdwg.mxu0
      %v132 = vmul.f32 %v124, 0.5
      %v133 = vmul.f32 %v129, 0.5
      %v134 = vrcp.pop 1.4142135
      %v135 = vmul.f32 %v124, %v134
      %v136 = vmul.f32 %v129, %v134
      %v137 = verf.f32.pop %v135
      %v138 = verf.f32.pop %v136
      %v139 = vadd.f32 %v137, 1.0
      %v140 = vadd.f32 %v138, 1.0
      %v141 = vmul.f32 %v132, %v139
      %v142 = vmul.f32 %v133, %v140
      %v143 = vld [vmem:[%s3] sm:$0xff]
      %v144 = vld [vmem:[%s3 + $0x8] sm:$0xff]
      %v145 = vld [vmem:[%s3 + $0x10] sm:$0xff]
      %v146 = vld [vmem:[%s3 + $0x18] sm:$0xff]
      %v147 = vld [vmem:[%s3 + $0x20] sm:$0xff]
      %v148 = vld [vmem:[%s3 + $0x28] sm:$0xff]
      %v149 = vld [vmem:[%s3 + $0x30] sm:$0xff]
      %v150 = vld [vmem:[%s3 + $0x38] sm:$0xff]
      %v151 = vld [vmem:[%s4] sm:$0x1]
      %v153 = vlaneseq
      %v154 = vshrl.u32 %v153, 7
      %v155 = vsub.s32 0, %v154
      %v156 = vrot.slane %v151, %v155
      %vm158 = vcmask 523264
      %v160 = vsel %vm158, %v141, 0
      %v163 = vsel %vm158, %v142, 0
      %165 = vmatprep.subr.mxu0 0.0
      %166 = vmatpush1.msra.mxu0 0.0
      %167 = vmatprep.subr.mxu0 0.0
      %168 = vmatpush1.msra.mxu0 0.0
      %169 = vmatprep.subr.mxu0 0.0
      %170 = vmatpush1.msra.mxu0 0.0
      %171 = vmatprep.subr.mxu0 0.0
      %172 = vmatpush1.msra.mxu0 0.0
      %173 = vmatprep.subr.mxu0 0.0
      %174 = vmatpush1.msra.mxu0 0.0
      %175 = vmatprep.subr.mxu0 0.0
      %176 = vmatpush1.msra.mxu0 0.0
      %177 = vmatprep.subr.mxu0 0.0
      %178 = vmatpush1.msra.mxu0 0.0
      %179 = vmatprep.subr.mxu0 0.0
      %180 = vmatpush1.msra.mxu0 0.0
      %181 = vmatprep.subr.mxu0 0.0
      %182 = vmatpush1.msra.mxu0 %v150
      %183 = vmatprep.subr.mxu0 0.0
      %184 = vmatpush1.msra.mxu0 %v149
      %185 = vmatprep.subr.mxu0 0.0
      %186 = vmatpush1.msra.mxu0 %v148
      %187 = vmatprep.subr.mxu0 0.0
      %188 = vmatpush1.msra.mxu0 %v147
      %189 = vmatprep.subr.mxu0 0.0
      %190 = vmatpush1.msra.mxu0 %v146
      %191 = vmatprep.subr.mxu0 0.0
      %192 = vmatpush1.msra.mxu0 %v145
      %193 = vmatprep.subr.mxu0 0.0
      %194 = vmatpush1.msra.mxu0 %v144
      %195 = vmatprep.subr.mxu0 0.0
      %196 = vmatpush1.msra.mxu0 %v143
      %197 = vmatprep.subr.mxu0 0.0
      %198 = vmatpush2.msra.mxu0 0.0
      %199 = vmatprep.subr.mxu0 0.0
      %200 = vmatpush2.msra.mxu0 0.0
      %201 = vmatprep.subr.mxu0 0.0
      %202 = vmatpush2.msra.mxu0 0.0
      %203 = vmatprep.subr.mxu0 0.0
      %204 = vmatpush2.msra.mxu0 0.0
      %205 = vmatprep.subr.mxu0 0.0
      %206 = vmatpush2.msra.mxu0 0.0
      %207 = vmatprep.subr.mxu0 0.0
      %208 = vmatpush2.msra.mxu0 0.0
      %209 = vmatprep.subr.mxu0 0.0
      %210 = vmatpush2.msra.mxu0 0.0
      %211 = vmatprep.subr.mxu0 0.0
      %212 = vmatpush2.msra.mxu0 0.0
      %213 = vmatprep.subr.mxu0 0.0
      %214 = vmatpush2.msra.mxu0 0.0
      %215 = vmatprep.subr.mxu0 0.0
      %216 = vmatpush2.msra.mxu0 0.0
      %217 = vmatprep.subr.mxu0 0.0
      %218 = vmatpush2.msra.mxu0 0.0
      %219 = vmatprep.subr.mxu0 0.0
      %220 = vmatpush2.msra.mxu0 0.0
      %221 = vmatprep.subr.mxu0 0.0
      %222 = vmatpush2.msra.mxu0 0.0
      %223 = vmatprep.subr.mxu0 0.0
      %224 = vmatpush2.msra.mxu0 0.0
      %225 = vmatprep.subr.mxu0 0.0
      %226 = vmatpush2.msra.mxu0 0.0
      %227 = vmatprep.subr.mxu0 0.0
      %228 = vmatpush2.msra.mxu0 0.0
      %229 = vmatprep.mubr.f32.mxu0 0.0
      %230 = vmatmul.mubr.f32.gmra.mxu0 %v160
      %v231 = vpop.f32.mrf.mxu0
      %v232 = vadd.f32 %v156, %v231
      %v233 = vpop.f32.mrf.mxu0
      %234 = vmatprep.mubr.f32.mxu0 0.0
      %235 = vmatmul.mubr.f32.gmra.mxu0 %v163
      %v236 = vpop.f32.mrf.mxu0
      %v237 = vadd.f32 %v156, %v236
      %v238 = vpop.f32.mrf.mxu0
      %239 = vdwg.mxu0
      %v240 = vmul.f32 %v232, 0.5
      %v241 = vmul.f32 %v237, 0.5
      %v242 = vmul.f32 %v232, %v134
      %v243 = vmul.f32 %v237, %v134
      %v244 = verf.f32.pop %v242
      %v245 = verf.f32.pop %v243
      %v246 = vadd.f32 %v244, 1.0
      %v247 = vadd.f32 %v245, 1.0
      %v248 = vmul.f32 %v240, %v246
      %v249 = vmul.f32 %v241, %v247
      %v250 = vld [vmem:[%s5] sm:$0xff]
      %v251 = vld [vmem:[%s5 + $0x8] sm:$0xff]
      %v252 = vld [vmem:[%s5 + $0x10] sm:$0xff]
      %v253 = vld [vmem:[%s5 + $0x18] sm:$0xff]
      %v254 = vld [vmem:[%s5 + $0x20] sm:$0xff]
      %v255 = vld [vmem:[%s5 + $0x28] sm:$0xff]
      %v256 = vld [vmem:[%s5 + $0x30] sm:$0xff]
      %v257 = vld [vmem:[%s5 + $0x38] sm:$0xff]
      %v258 = vld [vmem:[%s6] sm:$0x1]
      %v260 = vlaneseq
      %v261 = vshrl.u32 %v260, 7
      %v262 = vsub.s32 0, %v261
      %v263 = vrot.slane %v258, %v262
      %v266 = vsel %vm158, %v248, 0
      %v269 = vsel %vm158, %v249, 0
      %271 = vmatprep.subr.mxu0 0.0
      %272 = vmatpush1.msra.mxu0 0.0
      %273 = vmatprep.subr.mxu0 0.0
      %274 = vmatpush1.msra.mxu0 0.0
      %275 = vmatprep.subr.mxu0 0.0
      %276 = vmatpush1.msra.mxu0 0.0
      %277 = vmatprep.subr.mxu0 0.0
      %278 = vmatpush1.msra.mxu0 0.0
      %279 = vmatprep.subr.mxu0 0.0
      %280 = vmatpush1.msra.mxu0 0.0
      %281 = vmatprep.subr.mxu0 0.0
      %282 = vmatpush1.msra.mxu0 0.0
      %283 = vmatprep.subr.mxu0 0.0
      %284 = vmatpush1.msra.mxu0 0.0
      %285 = vmatprep.subr.mxu0 0.0
      %286 = vmatpush1.msra.mxu0 0.0
      %287 = vmatprep.subr.mxu0 0.0
      %288 = vmatpush1.msra.mxu0 %v257
      %289 = vmatprep.subr.mxu0 0.0
      %290 = vmatpush1.msra.mxu0 %v256
      %291 = vmatprep.subr.mxu0 0.0
      %292 = vmatpush1.msra.mxu0 %v255
      %293 = vmatprep.subr.mxu0 0.0
      %294 = vmatpush1.msra.mxu0 %v254
      %295 = vmatprep.subr.mxu0 0.0
      %296 = vmatpush1.msra.mxu0 %v253
      %297 = vmatprep.subr.mxu0 0.0
      %298 = vmatpush1.msra.mxu0 %v252
      %299 = vmatprep.subr.mxu0 0.0
      %300 = vmatpush1.msra.mxu0 %v251
      %301 = vmatprep.subr.mxu0 0.0
      %302 = vmatpush1.msra.mxu0 %v250
      %303 = vmatprep.subr.mxu0 0.0
      %304 = vmatpush2.msra.mxu0 0.0
      %305 = vmatprep.subr.mxu0 0.0
      %306 = vmatpush2.msra.mxu0 0.0
      %307 = vmatprep.subr.mxu0 0.0
      %308 = vmatpush2.msra.mxu0 0.0
      %309 = vmatprep.subr.mxu0 0.0
      %310 = vmatpush2.msra.mxu0 0.0
      %311 = vmatprep.subr.mxu0 0.0
      %312 = vmatpush2.msra.mxu0 0.0
      %313 = vmatprep.subr.mxu0 0.0
      %314 = vmatpush2.msra.mxu0 0.0
      %315 = vmatprep.subr.mxu0 0.0
      %316 = vmatpush2.msra.mxu0 0.0
      %317 = vmatprep.subr.mxu0 0.0
      %318 = vmatpush2.msra.mxu0 0.0
      %319 = vmatprep.subr.mxu0 0.0
      %320 = vmatpush2.msra.mxu0 0.0
      %321 = vmatprep.subr.mxu0 0.0
      %322 = vmatpush2.msra.mxu0 0.0
      %323 = vmatprep.subr.mxu0 0.0
      %324 = vmatpush2.msra.mxu0 0.0
      %325 = vmatprep.subr.mxu0 0.0
      %326 = vmatpush2.msra.mxu0 0.0
      %327 = vmatprep.subr.mxu0 0.0
      %328 = vmatpush2.msra.mxu0 0.0
      %329 = vmatprep.subr.mxu0 0.0
      %330 = vmatpush2.msra.mxu0 0.0
      %331 = vmatprep.subr.mxu0 0.0
      %332 = vmatpush2.msra.mxu0 0.0
      %333 = vmatprep.subr.mxu0 0.0
      %334 = vmatpush2.msra.mxu0 0.0
      %335 = vmatprep.mubr.f32.mxu0 0.0
      %336 = vmatmul.mubr.f32.gmra.mxu0 %v266
      %v337 = vpop.f32.mrf.mxu0
      %v338 = vadd.f32 %v263, %v337
      %v339 = vpop.f32.mrf.mxu0
      %340 = vmatprep.mubr.f32.mxu0 0.0
      %341 = vmatmul.mubr.f32.gmra.mxu0 %v269
      %v342 = vpop.f32.mrf.mxu0
      %v343 = vadd.f32 %v263, %v342
      %v344 = vpop.f32.mrf.mxu0
      %345 = vdwg.mxu0
      %v346 = vmul.f32 %v338, %v338
      %v347 = vmul.f32 %v343, %v343
      %v348 = vsel %vm50, %v346, 0.0
      %349 = vadd.xlane.f32.xlu0 %v348
      %v350 = vpop.xlane.xlu0 %349
      %v351 = vsel %vm50, %v347, 0.0
      %352 = vadd.xlane.f32.xlu0 %v351
      %v353 = vpop.xlane.xlu0 %352
      %v354 = vmax.f32 %v350, 1e-24
      %v355 = vmax.f32 %v353, 1e-24
      %v356 = vrsqrt.pop %v354
      %v357 = vrsqrt.pop %v355
      %v358 = vmul.f32 %v338, %v356
      %v359 = vmul.f32 %v343, %v357
      %360 = vst.msk [vmem:[#allocation2] sm:$0xff] %vm50, %v358
      %361 = vst.msk [vmem:[#allocation2 + $0x8] sm:$0xff] %vm50, %v359
    $region41: #{tpu_custom_call.1} parent=1 // pred_fallthru
      _
    %v362 = vld [vmem:[#allocation2] sm:$0xff]
    %v363 = vld [vmem:[#allocation2 + $0x8] sm:$0xff]
    %v364 = vld [vmem:[%s7] sm:$0xff]
    %v365 = vld [vmem:[%s7 + $0x8] sm:$0xff]
    %v366 = vld [vmem:[%s7 + $0x10] sm:$0xff]
    %v367 = vld [vmem:[%s7 + $0x18] sm:$0xff]
    %v368 = vld [vmem:[%s8] sm:$0x1]
    %v370 = vlaneseq
    %v371 = vshrl.u32 %v370, 7
    %v372 = vsub.s32 0, %v371
    %v373 = vrot.slane %v368, %v372
    %vm375 = vcmask 261120
    %v377 = vsel %vm375, %v362, 0
    %v380 = vsel %vm375, %v363, 0
    %382 = vmatprep.subr.mxu0 0.0
    %383 = vmatpush1.msra.mxu0 0.0
    %384 = vmatprep.subr.mxu0 0.0
    %385 = vmatpush1.msra.mxu0 0.0
    %386 = vmatprep.subr.mxu0 0.0
    %387 = vmatpush1.msra.mxu0 0.0
    %388 = vmatprep.subr.mxu0 0.0
    %389 = vmatpush1.msra.mxu0 0.0
    %390 = vmatprep.subr.mxu0 0.0
    %391 = vmatpush1.msra.mxu0 0.0
    %392 = vmatprep.subr.mxu0 0.0
    %393 = vmatpush1.msra.mxu0 0.0
    %394 = vmatprep.subr.mxu0 0.0
    %395 = vmatpush1.msra.mxu0 0.0
    %396 = vmatprep.subr.mxu0 0.0
    %397 = vmatpush1.msra.mxu0 0.0
    %398 = vmatprep.subr.mxu0 0.0
    %399 = vmatpush1.msra.mxu0 0.0
    %400 = vmatprep.subr.mxu0 0.0
    %401 = vmatpush1.msra.mxu0 0.0
    %402 = vmatprep.subr.mxu0 0.0
    %403 = vmatpush1.msra.mxu0 0.0
    %404 = vmatprep.subr.mxu0 0.0
    %405 = vmatpush1.msra.mxu0 0.0
    %406 = vmatprep.subr.mxu0 0.0
    %407 = vmatpush1.msra.mxu0 %v367
    %408 = vmatprep.subr.mxu0 0.0
    %409 = vmatpush1.msra.mxu0 %v366
    %410 = vmatprep.subr.mxu0 0.0
    %411 = vmatpush1.msra.mxu0 %v365
    %412 = vmatprep.subr.mxu0 0.0
    %413 = vmatpush1.msra.mxu0 %v364
    %414 = vmatprep.subr.mxu0 0.0
    %415 = vmatpush2.msra.mxu0 0.0
    %416 = vmatprep.subr.mxu0 0.0
    %417 = vmatpush2.msra.mxu0 0.0
    %418 = vmatprep.subr.mxu0 0.0
    %419 = vmatpush2.msra.mxu0 0.0
    %420 = vmatprep.subr.mxu0 0.0
    %421 = vmatpush2.msra.mxu0 0.0
    %422 = vmatprep.subr.mxu0 0.0
    %423 = vmatpush2.msra.mxu0 0.0
    %424 = vmatprep.subr.mxu0 0.0
    %425 = vmatpush2.msra.mxu0 0.0
    %426 = vmatprep.subr.mxu0 0.0
    %427 = vmatpush2.msra.mxu0 0.0
    %428 = vmatprep.subr.mxu0 0.0
    %429 = vmatpush2.msra.mxu0 0.0
    %430 = vmatprep.subr.mxu0 0.0
    %431 = vmatpush2.msra.mxu0 0.0
    %432 = vmatprep.subr.mxu0 0.0
    %433 = vmatpush2.msra.mxu0 0.0
    %434 = vmatprep.subr.mxu0 0.0
    %435 = vmatpush2.msra.mxu0 0.0
    %436 = vmatprep.subr.mxu0 0.0
    %437 = vmatpush2.msra.mxu0 0.0
    %438 = vmatprep.subr.mxu0 0.0
    %439 = vmatpush2.msra.mxu0 0.0
    %440 = vmatprep.subr.mxu0 0.0
    %441 = vmatpush2.msra.mxu0 0.0
    %442 = vmatprep.subr.mxu0 0.0
    %443 = vmatpush2.msra.mxu0 0.0
    %444 = vmatprep.subr.mxu0 0.0
    %445 = vmatpush2.msra.mxu0 0.0
    %446 = vmatprep.mubr.f32.mxu0 0.0
    %447 = vmatmul.mubr.f32.gmra.mxu0 %v377
    %v448 = vpop.f32.mrf.mxu0
    %v449 = vadd.f32 %v373, %v448
    %v450 = vpop.f32.mrf.mxu0
    %451 = vmatprep.mubr.f32.mxu0 0.0
    %452 = vmatmul.mubr.f32.gmra.mxu0 %v380
    %v453 = vpop.f32.mrf.mxu0
    %v454 = vadd.f32 %v373, %v453
    %v455 = vpop.f32.mrf.mxu0
    %456 = vdwg.mxu0
    %vm457 = vcmask 130048
    %458 = vst.msk [vmem:[#allocation3] sm:$0xff] %vm457, %v449
    %459 = vst.msk [vmem:[#allocation3 + $0x8] sm:$0xff] %vm457, %v454
    // Predicated region
    $region42: #{tpu_custom_call.1} parent=1 // pred_check
      _
    $region43: #{tpu_custom_call.1} parent=1 // pred_check_branch
      %461 = sbr.rel (0) target = $region45
    $region44: #{tpu_custom_call.1} parent=1 // pred_region
      %s463 = ssub.s32 256, 256
      %464 = vsyncadd [#allocation4], %s463
      %s465 = sshll.u32 [#allocation3], 4
      %s466 = int_to_ptr.vmem [resolvable:$true] %s465
      %471 = dma.vmem_to_hbm [thread:$0]  %s466, 256, %s9, [#allocation4], 128, 128, 8
    $region45: #{tpu_custom_call.1} parent=1 // pred_fallthru
      _
    // Predicated region
    $region46: #{tpu_custom_call.1} parent=1 // pred_check
      _
    $region47: #{tpu_custom_call.1} parent=1 // pred_check_branch
      %473 = sbr.rel (0) target = $region49
    $region48: #{tpu_custom_call.1} parent=1 // pred_region
      %474 = dma.done [#allocation4], 256
    $region49: #{tpu_custom_call.1} parent=1 // pred_fallthru
      _
    %475 = vsyncpa [#allocation4], 1

// kernel: tpu_custom_call.1
$region0: #{tpu_custom_call.1}
  #allocation0 [shape = 'u32[]', space=smem, size = 0x4, offset = 0x4, fixed_abs, tag = 'smem constant byte address 0x4 - core index']
  #allocation1 [shape = 'u32[144,128]{1,0:T(1,128)}', space=vmem, size = 0x12000, scoped, tag = 'internal scratch']
  #allocation2 [shape = 'f32[16,32]{1,0:T(8,128)}', space=vmem, size = 0x2000, scoped, tag = 'scratch operand']
  %s0 = inlined_call_operand.vmem [shape: f32[16,32], index: 0, kind: input, shape index: {}]
  %s1 = inlined_call_operand.vmem [shape: f32[32,64], index: 1, kind: input, shape index: {}]
  %s2 = inlined_call_operand.vmem [shape: f32[1,64], index: 2, kind: input, shape index: {}]
  %s3 = inlined_call_operand.vmem [shape: f32[64,64], index: 3, kind: input, shape index: {}]
  %s4 = inlined_call_operand.vmem [shape: f32[1,64], index: 4, kind: input, shape index: {}]
  %s5 = inlined_call_operand.vmem [shape: f32[64,32], index: 5, kind: input, shape index: {}]
  %s6 = inlined_call_operand.vmem [shape: f32[1,32], index: 6, kind: input, shape index: {}]
  %s7 = inlined_call_operand.vmem [shape: f32[32,16], index: 7, kind: input, shape index: {}]
  %s8 = inlined_call_operand.vmem [shape: f32[1,16], index: 8, kind: input, shape index: {}]
  %s9 = inlined_call_operand.hbm [shape: f32[16,16], index: 9, kind: output, shape index: {}]
  %s10 = sld [smem:[#allocation0]]
  $region50: #{tpu_custom_call.1} parent=0
    _
  %s12 = ssub.s32 1, %s10
  %s13 = scalar_select 0, %s12, %s10
  $region1: #{tpu_custom_call.1} parent=0
    #allocation3 [shape = 'u8[8192]{0}', space=vmem, size = 0x2000, scoped, tag = 'output window, operand 0, single buffered']
    #allocation4 [shape = 's32[1]{0}', space=sflag, size = 0x4, scoped, tag = 'scoped memory for tpu_custom_call.1']
    %14 = vsyncpa [#allocation4], 0
    // Predicated region
    $region2: #{tpu_custom_call.1} parent=1 // pred_check
      _
    $region3: #{tpu_custom_call.1} parent=1 // pred_check_branch
      %16 = sbr.rel (0) target = $region5
    $region4: #{tpu_custom_call.1} parent=1 // pred_region
      _
    $region5: #{tpu_custom_call.1} parent=1 // pred_fallthru
      _
    // Predicated region
    $region6: #{tpu_custom_call.1} parent=1 // pred_check
      _
    $region7: #{tpu_custom_call.1} parent=1 // pred_check_branch
      %18 = sbr.rel (0) target = $region9
    $region8: #{tpu_custom_call.1} parent=1 // pred_region
      _
    $region9: #{tpu_custom_call.1} parent=1 // pred_fallthru
      _
    // Predicated region
    $region10: #{tpu_custom_call.1} parent=1 // pred_check
      _
    $region11: #{tpu_custom_call.1} parent=1 // pred_check_branch
      %20 = sbr.rel (0) target = $region13
    $region12: #{tpu_custom_call.1} parent=1 // pred_region
      _
    $region13: #{tpu_custom_call.1} parent=1 // pred_fallthru
      _
    // Predicated region
    $region14: #{tpu_custom_call.1} parent=1 // pred_check
      _
    $region15: #{tpu_custom_call.1} parent=1 // pred_check_branch
      %22 = sbr.rel (0) target = $region17
    $region16: #{tpu_custom_call.1} parent=1 // pred_region
      _
    $region17: #{tpu_custom_call.1} parent=1 // pred_fallthru
      _
    // Predicated region
    $region18: #{tpu_custom_call.1} parent=1 // pred_check
      _
    $region19: #{tpu_custom_call.1} parent=1 // pred_check_branch
      %24 = sbr.rel (0) target = $region21
    $region20: #{tpu_custom_call.1} parent=1 // pred_region
      _
    $region21: #{tpu_custom_call.1} parent=1 // pred_fallthru
      _
    // Predicated region
    $region22: #{tpu_custom_call.1} parent=1 // pred_check
      _
    $region23: #{tpu_custom_call.1} parent=1 // pred_check_branch
      %26 = sbr.rel (0) target = $region25
    $region24: #{tpu_custom_call.1} parent=1 // pred_region
      _
    $region25: #{tpu_custom_call.1} parent=1 // pred_fallthru
      _
    // Predicated region
    $region26: #{tpu_custom_call.1} parent=1 // pred_check
      _
    $region27: #{tpu_custom_call.1} parent=1 // pred_check_branch
      %28 = sbr.rel (0) target = $region29
    $region28: #{tpu_custom_call.1} parent=1 // pred_region
      _
    $region29: #{tpu_custom_call.1} parent=1 // pred_fallthru
      _
    // Predicated region
    $region30: #{tpu_custom_call.1} parent=1 // pred_check
      _
    $region31: #{tpu_custom_call.1} parent=1 // pred_check_branch
      %30 = sbr.rel (0) target = $region33
    $region32: #{tpu_custom_call.1} parent=1 // pred_region
      _
    $region33: #{tpu_custom_call.1} parent=1 // pred_fallthru
      _
    // Predicated region
    $region34: #{tpu_custom_call.1} parent=1 // pred_check
      _
    $region35: #{tpu_custom_call.1} parent=1 // pred_check_branch
      %32 = sbr.rel (0) target = $region37
    $region36: #{tpu_custom_call.1} parent=1 // pred_region
      _
    $region37: #{tpu_custom_call.1} parent=1 // pred_fallthru
      _
    %p33 = scmp.eq.s32.totalorder 0, 0
    // Predicated region
    $region38: #{tpu_custom_call.1} parent=1 // pred_check
      %p34 = pneg %p33
    $region39: #{tpu_custom_call.1} parent=1 // pred_check_branch
      %36 = sbr.rel (%p34) target = $region41
    $region40: #{tpu_custom_call.1} parent=1 // pred_region
      %v37 = vld [vmem:[%s0] sm:$0xff]
      %v38 = vld [vmem:[%s0 + $0x8] sm:$0xff]
      %v39 = vld [vmem:[%s1] sm:$0xff]
      %v40 = vld [vmem:[%s1 + $0x8] sm:$0xff]
      %v41 = vld [vmem:[%s1 + $0x10] sm:$0xff]
      %v42 = vld [vmem:[%s1 + $0x18] sm:$0xff]
      %v43 = vld [vmem:[%s2] sm:$0x1]
      %v45 = vlaneseq
      %v46 = vshrl.u32 %v45, 7
      %v47 = vsub.s32 0, %v46
      %v48 = vrot.slane %v43, %v47
      %vm50 = vcmask 261120
      %v52 = vsel %vm50, %v37, 0
      %v55 = vsel %vm50, %v38, 0
      %57 = vmatprep.subr.mxu0 0.0
      %58 = vmatpush1.msra.mxu0 0.0
      %59 = vmatprep.subr.mxu0 0.0
      %60 = vmatpush1.msra.mxu0 0.0
      %61 = vmatprep.subr.mxu0 0.0
      %62 = vmatpush1.msra.mxu0 0.0
      %63 = vmatprep.subr.mxu0 0.0
      %64 = vmatpush1.msra.mxu0 0.0
      %65 = vmatprep.subr.mxu0 0.0
      %66 = vmatpush1.msra.mxu0 0.0
      %67 = vmatprep.subr.mxu0 0.0
      %68 = vmatpush1.msra.mxu0 0.0
      %69 = vmatprep.subr.mxu0 0.0
      %70 = vmatpush1.msra.mxu0 0.0
      %71 = vmatprep.subr.mxu0 0.0
      %72 = vmatpush1.msra.mxu0 0.0
      %73 = vmatprep.subr.mxu0 0.0
      %74 = vmatpush1.msra.mxu0 0.0
      %75 = vmatprep.subr.mxu0 0.0
      %76 = vmatpush1.msra.mxu0 0.0
      %77 = vmatprep.subr.mxu0 0.0
      %78 = vmatpush1.msra.mxu0 0.0
      %79 = vmatprep.subr.mxu0 0.0
      %80 = vmatpush1.msra.mxu0 0.0
      %81 = vmatprep.subr.mxu0 0.0
      %82 = vmatpush1.msra.mxu0 %v42
      %83 = vmatprep.subr.mxu0 0.0
      %84 = vmatpush1.msra.mxu0 %v41
      %85 = vmatprep.subr.mxu0 0.0
      %86 = vmatpush1.msra.mxu0 %v40
      %87 = vmatprep.subr.mxu0 0.0
      %88 = vmatpush1.msra.mxu0 %v39
      %89 = vmatprep.subr.mxu0 0.0
      %90 = vmatpush2.msra.mxu0 0.0
      %91 = vmatprep.subr.mxu0 0.0
      %92 = vmatpush2.msra.mxu0 0.0
      %93 = vmatprep.subr.mxu0 0.0
      %94 = vmatpush2.msra.mxu0 0.0
      %95 = vmatprep.subr.mxu0 0.0
      %96 = vmatpush2.msra.mxu0 0.0
      %97 = vmatprep.subr.mxu0 0.0
      %98 = vmatpush2.msra.mxu0 0.0
      %99 = vmatprep.subr.mxu0 0.0
      %100 = vmatpush2.msra.mxu0 0.0
      %101 = vmatprep.subr.mxu0 0.0
      %102 = vmatpush2.msra.mxu0 0.0
      %103 = vmatprep.subr.mxu0 0.0
      %104 = vmatpush2.msra.mxu0 0.0
      %105 = vmatprep.subr.mxu0 0.0
      %106 = vmatpush2.msra.mxu0 0.0
      %107 = vmatprep.subr.mxu0 0.0
      %108 = vmatpush2.msra.mxu0 0.0
      %109 = vmatprep.subr.mxu0 0.0
      %110 = vmatpush2.msra.mxu0 0.0
      %111 = vmatprep.subr.mxu0 0.0
      %112 = vmatpush2.msra.mxu0 0.0
      %113 = vmatprep.subr.mxu0 0.0
      %114 = vmatpush2.msra.mxu0 0.0
      %115 = vmatprep.subr.mxu0 0.0
      %116 = vmatpush2.msra.mxu0 0.0
      %117 = vmatprep.subr.mxu0 0.0
      %118 = vmatpush2.msra.mxu0 0.0
      %119 = vmatprep.subr.mxu0 0.0
      %120 = vmatpush2.msra.mxu0 0.0
      %121 = vmatprep.mubr.f32.mxu0 0.0
      %122 = vmatmul.mubr.f32.gmra.mxu0 %v52
      %v123 = vpop.f32.mrf.mxu0
      %v124 = vadd.f32 %v48, %v123
      %v125 = vpop.f32.mrf.mxu0
      %126 = vmatprep.mubr.f32.mxu0 0.0
      %127 = vmatmul.mubr.f32.gmra.mxu0 %v55
      %v128 = vpop.f32.mrf.mxu0
      %v129 = vadd.f32 %v48, %v128
      %v130 = vpop.f32.mrf.mxu0
      %131 = vdwg.mxu0
      %v132 = vmul.f32 %v124, 0.5
      %v133 = vmul.f32 %v129, 0.5
      %v134 = vrcp.pop 1.4142135
      %v135 = vmul.f32 %v124, %v134
      %v136 = vmul.f32 %v129, %v134
      %v137 = verf.f32.pop %v135
      %v138 = verf.f32.pop %v136
      %v139 = vadd.f32 %v137, 1.0
      %v140 = vadd.f32 %v138, 1.0
      %v141 = vmul.f32 %v132, %v139
      %v142 = vmul.f32 %v133, %v140
      %v143 = vld [vmem:[%s3] sm:$0xff]
      %v144 = vld [vmem:[%s3 + $0x8] sm:$0xff]
      %v145 = vld [vmem:[%s3 + $0x10] sm:$0xff]
      %v146 = vld [vmem:[%s3 + $0x18] sm:$0xff]
      %v147 = vld [vmem:[%s3 + $0x20] sm:$0xff]
      %v148 = vld [vmem:[%s3 + $0x28] sm:$0xff]
      %v149 = vld [vmem:[%s3 + $0x30] sm:$0xff]
      %v150 = vld [vmem:[%s3 + $0x38] sm:$0xff]
      %v151 = vld [vmem:[%s4] sm:$0x1]
      %v153 = vlaneseq
      %v154 = vshrl.u32 %v153, 7
      %v155 = vsub.s32 0, %v154
      %v156 = vrot.slane %v151, %v155
      %vm158 = vcmask 523264
      %v160 = vsel %vm158, %v141, 0
      %v163 = vsel %vm158, %v142, 0
      %165 = vmatprep.subr.mxu0 0.0
      %166 = vmatpush1.msra.mxu0 0.0
      %167 = vmatprep.subr.mxu0 0.0
      %168 = vmatpush1.msra.mxu0 0.0
      %169 = vmatprep.subr.mxu0 0.0
      %170 = vmatpush1.msra.mxu0 0.0
      %171 = vmatprep.subr.mxu0 0.0
      %172 = vmatpush1.msra.mxu0 0.0
      %173 = vmatprep.subr.mxu0 0.0
      %174 = vmatpush1.msra.mxu0 0.0
      %175 = vmatprep.subr.mxu0 0.0
      %176 = vmatpush1.msra.mxu0 0.0
      %177 = vmatprep.subr.mxu0 0.0
      %178 = vmatpush1.msra.mxu0 0.0
      %179 = vmatprep.subr.mxu0 0.0
      %180 = vmatpush1.msra.mxu0 0.0
      %181 = vmatprep.subr.mxu0 0.0
      %182 = vmatpush1.msra.mxu0 %v150
      %183 = vmatprep.subr.mxu0 0.0
      %184 = vmatpush1.msra.mxu0 %v149
      %185 = vmatprep.subr.mxu0 0.0
      %186 = vmatpush1.msra.mxu0 %v148
      %187 = vmatprep.subr.mxu0 0.0
      %188 = vmatpush1.msra.mxu0 %v147
      %189 = vmatprep.subr.mxu0 0.0
      %190 = vmatpush1.msra.mxu0 %v146
      %191 = vmatprep.subr.mxu0 0.0
      %192 = vmatpush1.msra.mxu0 %v145
      %193 = vmatprep.subr.mxu0 0.0
      %194 = vmatpush1.msra.mxu0 %v144
      %195 = vmatprep.subr.mxu0 0.0
      %196 = vmatpush1.msra.mxu0 %v143
      %197 = vmatprep.subr.mxu0 0.0
      %198 = vmatpush2.msra.mxu0 0.0
      %199 = vmatprep.subr.mxu0 0.0
      %200 = vmatpush2.msra.mxu0 0.0
      %201 = vmatprep.subr.mxu0 0.0
      %202 = vmatpush2.msra.mxu0 0.0
      %203 = vmatprep.subr.mxu0 0.0
      %204 = vmatpush2.msra.mxu0 0.0
      %205 = vmatprep.subr.mxu0 0.0
      %206 = vmatpush2.msra.mxu0 0.0
      %207 = vmatprep.subr.mxu0 0.0
      %208 = vmatpush2.msra.mxu0 0.0
      %209 = vmatprep.subr.mxu0 0.0
      %210 = vmatpush2.msra.mxu0 0.0
      %211 = vmatprep.subr.mxu0 0.0
      %212 = vmatpush2.msra.mxu0 0.0
      %213 = vmatprep.subr.mxu0 0.0
      %214 = vmatpush2.msra.mxu0 0.0
      %215 = vmatprep.subr.mxu0 0.0
      %216 = vmatpush2.msra.mxu0 0.0
      %217 = vmatprep.subr.mxu0 0.0
      %218 = vmatpush2.msra.mxu0 0.0
      %219 = vmatprep.subr.mxu0 0.0
      %220 = vmatpush2.msra.mxu0 0.0
      %221 = vmatprep.subr.mxu0 0.0
      %222 = vmatpush2.msra.mxu0 0.0
      %223 = vmatprep.subr.mxu0 0.0
      %224 = vmatpush2.msra.mxu0 0.0
      %225 = vmatprep.subr.mxu0 0.0
      %226 = vmatpush2.msra.mxu0 0.0
      %227 = vmatprep.subr.mxu0 0.0
      %228 = vmatpush2.msra.mxu0 0.0
      %229 = vmatprep.mubr.f32.mxu0 0.0
      %230 = vmatmul.mubr.f32.gmra.mxu0 %v160
      %v231 = vpop.f32.mrf.mxu0
      %v232 = vadd.f32 %v156, %v231
      %v233 = vpop.f32.mrf.mxu0
      %234 = vmatprep.mubr.f32.mxu0 0.0
      %235 = vmatmul.mubr.f32.gmra.mxu0 %v163
      %v236 = vpop.f32.mrf.mxu0
      %v237 = vadd.f32 %v156, %v236
      %v238 = vpop.f32.mrf.mxu0
      %239 = vdwg.mxu0
      %v240 = vmul.f32 %v232, 0.5
      %v241 = vmul.f32 %v237, 0.5
      %v242 = vmul.f32 %v232, %v134
      %v243 = vmul.f32 %v237, %v134
      %v244 = verf.f32.pop %v242
      %v245 = verf.f32.pop %v243
      %v246 = vadd.f32 %v244, 1.0
      %v247 = vadd.f32 %v245, 1.0
      %v248 = vmul.f32 %v240, %v246
      %v249 = vmul.f32 %v241, %v247
      %v250 = vld [vmem:[%s5] sm:$0xff]
      %v251 = vld [vmem:[%s5 + $0x8] sm:$0xff]
      %v252 = vld [vmem:[%s5 + $0x10] sm:$0xff]
      %v253 = vld [vmem:[%s5 + $0x18] sm:$0xff]
      %v254 = vld [vmem:[%s5 + $0x20] sm:$0xff]
      %v255 = vld [vmem:[%s5 + $0x28] sm:$0xff]
      %v256 = vld [vmem:[%s5 + $0x30] sm:$0xff]
      %v257 = vld [vmem:[%s5 + $0x38] sm:$0xff]
      %v258 = vld [vmem:[%s6] sm:$0x1]
      %v260 = vlaneseq
      %v261 = vshrl.u32 %v260, 7
      %v262 = vsub.s32 0, %v261
      %v263 = vrot.slane %v258, %v262
      %v266 = vsel %vm158, %v248, 0
      %v269 = vsel %vm158, %v249, 0
      %271 = vmatprep.subr.mxu0 0.0
      %272 = vmatpush1.msra.mxu0 0.0
      %273 = vmatprep.subr.mxu0 0.0
      %274 = vmatpush1.msra.mxu0 0.0
      %275 = vmatprep.subr.mxu0 0.0
      %276 = vmatpush1.msra.mxu0 0.0
      %277 = vmatprep.subr.mxu0 0.0
      %278 = vmatpush1.msra.mxu0 0.0
      %279 = vmatprep.subr.mxu0 0.0
      %280 = vmatpush1.msra.mxu0 0.0
      %281 = vmatprep.subr.mxu0 0.0
      %282 = vmatpush1.msra.mxu0 0.0
      %283 = vmatprep.subr.mxu0 0.0
      %284 = vmatpush1.msra.mxu0 0.0
      %285 = vmatprep.subr.mxu0 0.0
      %286 = vmatpush1.msra.mxu0 0.0
      %287 = vmatprep.subr.mxu0 0.0
      %288 = vmatpush1.msra.mxu0 %v257
      %289 = vmatprep.subr.mxu0 0.0
      %290 = vmatpush1.msra.mxu0 %v256
      %291 = vmatprep.subr.mxu0 0.0
      %292 = vmatpush1.msra.mxu0 %v255
      %293 = vmatprep.subr.mxu0 0.0
      %294 = vmatpush1.msra.mxu0 %v254
      %295 = vmatprep.subr.mxu0 0.0
      %296 = vmatpush1.msra.mxu0 %v253
      %297 = vmatprep.subr.mxu0 0.0
      %298 = vmatpush1.msra.mxu0 %v252
      %299 = vmatprep.subr.mxu0 0.0
      %300 = vmatpush1.msra.mxu0 %v251
      %301 = vmatprep.subr.mxu0 0.0
      %302 = vmatpush1.msra.mxu0 %v250
      %303 = vmatprep.subr.mxu0 0.0
      %304 = vmatpush2.msra.mxu0 0.0
      %305 = vmatprep.subr.mxu0 0.0
      %306 = vmatpush2.msra.mxu0 0.0
      %307 = vmatprep.subr.mxu0 0.0
      %308 = vmatpush2.msra.mxu0 0.0
      %309 = vmatprep.subr.mxu0 0.0
      %310 = vmatpush2.msra.mxu0 0.0
      %311 = vmatprep.subr.mxu0 0.0
      %312 = vmatpush2.msra.mxu0 0.0
      %313 = vmatprep.subr.mxu0 0.0
      %314 = vmatpush2.msra.mxu0 0.0
      %315 = vmatprep.subr.mxu0 0.0
      %316 = vmatpush2.msra.mxu0 0.0
      %317 = vmatprep.subr.mxu0 0.0
      %318 = vmatpush2.msra.mxu0 0.0
      %319 = vmatprep.subr.mxu0 0.0
      %320 = vmatpush2.msra.mxu0 0.0
      %321 = vmatprep.subr.mxu0 0.0
      %322 = vmatpush2.msra.mxu0 0.0
      %323 = vmatprep.subr.mxu0 0.0
      %324 = vmatpush2.msra.mxu0 0.0
      %325 = vmatprep.subr.mxu0 0.0
      %326 = vmatpush2.msra.mxu0 0.0
      %327 = vmatprep.subr.mxu0 0.0
      %328 = vmatpush2.msra.mxu0 0.0
      %329 = vmatprep.subr.mxu0 0.0
      %330 = vmatpush2.msra.mxu0 0.0
      %331 = vmatprep.subr.mxu0 0.0
      %332 = vmatpush2.msra.mxu0 0.0
      %333 = vmatprep.subr.mxu0 0.0
      %334 = vmatpush2.msra.mxu0 0.0
      %335 = vmatprep.mubr.f32.mxu0 0.0
      %336 = vmatmul.mubr.f32.gmra.mxu0 %v266
      %v337 = vpop.f32.mrf.mxu0
      %v338 = vadd.f32 %v263, %v337
      %v339 = vpop.f32.mrf.mxu0
      %340 = vmatprep.mubr.f32.mxu0 0.0
      %341 = vmatmul.mubr.f32.gmra.mxu0 %v269
      %v342 = vpop.f32.mrf.mxu0
      %v343 = vadd.f32 %v263, %v342
      %v344 = vpop.f32.mrf.mxu0
      %345 = vdwg.mxu0
      %v346 = vmul.f32 %v338, %v338
      %v347 = vmul.f32 %v343, %v343
      %v348 = vsel %vm50, %v346, 0.0
      %349 = vadd.xlane.f32.xlu0 %v348
      %v350 = vpop.xlane.xlu0 %349
      %v351 = vsel %vm50, %v347, 0.0
      %352 = vadd.xlane.f32.xlu0 %v351
      %v353 = vpop.xlane.xlu0 %352
      %v354 = vmax.f32 %v350, 1e-24
      %v355 = vmax.f32 %v353, 1e-24
      %v356 = vrsqrt.pop %v354
      %v357 = vrsqrt.pop %v355
      %v358 = vmul.f32 %v338, %v356
      %v359 = vmul.f32 %v343, %v357
      %360 = vst.msk [vmem:[#allocation2] sm:$0xff] %vm50, %v358
      %361 = vst.msk [vmem:[#allocation2 + $0x8] sm:$0xff] %vm50, %v359
    $region41: #{tpu_custom_call.1} parent=1 // pred_fallthru
      _
    %v362 = vld [vmem:[#allocation2] sm:$0xff]
    %v363 = vld [vmem:[#allocation2 + $0x8] sm:$0xff]
    %v364 = vld [vmem:[%s7] sm:$0xff]
    %v365 = vld [vmem:[%s7 + $0x8] sm:$0xff]
    %v366 = vld [vmem:[%s7 + $0x10] sm:$0xff]
    %v367 = vld [vmem:[%s7 + $0x18] sm:$0xff]
    %v368 = vld [vmem:[%s8] sm:$0x1]
    %v370 = vlaneseq
    %v371 = vshrl.u32 %v370, 7
    %v372 = vsub.s32 0, %v371
    %v373 = vrot.slane %v368, %v372
    %vm375 = vcmask 261120
    %v377 = vsel %vm375, %v362, 0
    %v380 = vsel %vm375, %v363, 0
    %382 = vmatprep.subr.mxu0 0.0
    %383 = vmatpush1.msra.mxu0 0.0
    %384 = vmatprep.subr.mxu0 0.0
    %385 = vmatpush1.msra.mxu0 0.0
    %386 = vmatprep.subr.mxu0 0.0
    %387 = vmatpush1.msra.mxu0 0.0
    %388 = vmatprep.subr.mxu0 0.0
    %389 = vmatpush1.msra.mxu0 0.0
    %390 = vmatprep.subr.mxu0 0.0
    %391 = vmatpush1.msra.mxu0 0.0
    %392 = vmatprep.subr.mxu0 0.0
    %393 = vmatpush1.msra.mxu0 0.0
    %394 = vmatprep.subr.mxu0 0.0
    %395 = vmatpush1.msra.mxu0 0.0
    %396 = vmatprep.subr.mxu0 0.0
    %397 = vmatpush1.msra.mxu0 0.0
    %398 = vmatprep.subr.mxu0 0.0
    %399 = vmatpush1.msra.mxu0 0.0
    %400 = vmatprep.subr.mxu0 0.0
    %401 = vmatpush1.msra.mxu0 0.0
    %402 = vmatprep.subr.mxu0 0.0
    %403 = vmatpush1.msra.mxu0 0.0
    %404 = vmatprep.subr.mxu0 0.0
    %405 = vmatpush1.msra.mxu0 0.0
    %406 = vmatprep.subr.mxu0 0.0
    %407 = vmatpush1.msra.mxu0 %v367
    %408 = vmatprep.subr.mxu0 0.0
    %409 = vmatpush1.msra.mxu0 %v366
    %410 = vmatprep.subr.mxu0 0.0
    %411 = vmatpush1.msra.mxu0 %v365
    %412 = vmatprep.subr.mxu0 0.0
    %413 = vmatpush1.msra.mxu0 %v364
    %414 = vmatprep.subr.mxu0 0.0
    %415 = vmatpush2.msra.mxu0 0.0
    %416 = vmatprep.subr.mxu0 0.0
    %417 = vmatpush2.msra.mxu0 0.0
    %418 = vmatprep.subr.mxu0 0.0
    %419 = vmatpush2.msra.mxu0 0.0
    %420 = vmatprep.subr.mxu0 0.0
    %421 = vmatpush2.msra.mxu0 0.0
    %422 = vmatprep.subr.mxu0 0.0
    %423 = vmatpush2.msra.mxu0 0.0
    %424 = vmatprep.subr.mxu0 0.0
    %425 = vmatpush2.msra.mxu0 0.0
    %426 = vmatprep.subr.mxu0 0.0
    %427 = vmatpush2.msra.mxu0 0.0
    %428 = vmatprep.subr.mxu0 0.0
    %429 = vmatpush2.msra.mxu0 0.0
    %430 = vmatprep.subr.mxu0 0.0
    %431 = vmatpush2.msra.mxu0 0.0
    %432 = vmatprep.subr.mxu0 0.0
    %433 = vmatpush2.msra.mxu0 0.0
    %434 = vmatprep.subr.mxu0 0.0
    %435 = vmatpush2.msra.mxu0 0.0
    %436 = vmatprep.subr.mxu0 0.0
    %437 = vmatpush2.msra.mxu0 0.0
    %438 = vmatprep.subr.mxu0 0.0
    %439 = vmatpush2.msra.mxu0 0.0
    %440 = vmatprep.subr.mxu0 0.0
    %441 = vmatpush2.msra.mxu0 0.0
    %442 = vmatprep.subr.mxu0 0.0
    %443 = vmatpush2.msra.mxu0 0.0
    %444 = vmatprep.subr.mxu0 0.0
    %445 = vmatpush2.msra.mxu0 0.0
    %446 = vmatprep.mubr.f32.mxu0 0.0
    %447 = vmatmul.mubr.f32.gmra.mxu0 %v377
    %v448 = vpop.f32.mrf.mxu0
    %v449 = vadd.f32 %v373, %v448
    %v450 = vpop.f32.mrf.mxu0
    %451 = vmatprep.mubr.f32.mxu0 0.0
    %452 = vmatmul.mubr.f32.gmra.mxu0 %v380
    %v453 = vpop.f32.mrf.mxu0
    %v454 = vadd.f32 %v373, %v453
    %v455 = vpop.f32.mrf.mxu0
    %456 = vdwg.mxu0
    %vm457 = vcmask 130048
    %458 = vst.msk [vmem:[#allocation3] sm:$0xff] %vm457, %v449
    %459 = vst.msk [vmem:[#allocation3 + $0x8] sm:$0xff] %vm457, %v454
    // Predicated region
    $region42: #{tpu_custom_call.1} parent=1 // pred_check
      _
    $region43: #{tpu_custom_call.1} parent=1 // pred_check_branch
      %461 = sbr.rel (0) target = $region45
    $region44: #{tpu_custom_call.1} parent=1 // pred_region
      %s463 = ssub.s32 256, 256
      %464 = vsyncadd [#allocation4], %s463
      %s465 = sshll.u32 [#allocation3], 4
      %s466 = int_to_ptr.vmem [resolvable:$true] %s465
      %471 = dma.vmem_to_hbm [thread:$0]  %s466, 256, %s9, [#allocation4], 128, 128, 8
    $region45: #{tpu_custom_call.1} parent=1 // pred_fallthru
      _
    // Predicated region
    $region46: #{tpu_custom_call.1} parent=1 // pred_check
      _
    $region47: #{tpu_custom_call.1} parent=1 // pred_check_branch
      %473 = sbr.rel (0) target = $region49
    $region48: #{tpu_custom_call.1} parent=1 // pred_region
      %474 = dma.done [#allocation4], 256
    $region49: #{tpu_custom_call.1} parent=1 // pred_fallthru
      _
    %475 = vsyncpa [#allocation4], 1

</llo_original>
